<compile_context>
chip_gen: v5e
topology: v5e:2x2
jax: 0.10.0
libtpu: 0.0.40
codegen_flags: <defaults>
</compile_context>

<pallas_src>
import functools

import jax
import jax.numpy as jnp
from jax.experimental import pallas as pl
from jax.experimental.pallas import tpu as pltpu


def _round_up(x, m):
    return ((x + m - 1) // m) * m


def _ensemble_q_kernel(obs_ref, act_ref, w1o_ref, w1a_ref, b1_ref,
                       w2_ref, b2_ref, w3_ref, b3_ref, o_ref):
    # Fused concat: cat([obs, act], 1) @ W1 == obs @ W1[:obs_dim] + act @ W1[obs_dim:]
    h1 = jnp.dot(obs_ref[...], w1o_ref[...], preferred_element_type=jnp.float32)
    h1 = h1 + jnp.dot(act_ref[...], w1a_ref[...],
                      preferred_element_type=jnp.float32)
    h1 = jnp.maximum(h1 + b1_ref[...], 0.0)
    # Layer 2: Linear + ReLU
    h2 = jnp.dot(h1, w2_ref[...], preferred_element_type=jnp.float32)
    h2 = jnp.maximum(h2 + b2_ref[...], 0.0)
    # Output layer: Linear (Identity activation) -> true E-wide output block
    out = jnp.dot(h2, w3_ref[...], preferred_element_type=jnp.float32)
    o_ref[...] = (out + b3_ref[...]).astype(o_ref.dtype)


def _pick_batch_tile(batch, requested):
    """Static (trace-time) batch-tile selection.

    - Single grid step whenever the 8-row-padded batch fits the requested tile
      (no serial-loop overhead on single-TC v5e/v6e; no pointless split on v7x).
    - 2-way split only when each half is >= 256 rows (real work per v7x core).
    - For batches larger than the requested tile, tile at a multiple of 256
      (keeps MXU row groups full on v6e/v7x).
    """
    padded8 = _round_up(batch, 8)
    if padded8 <= requested:
        if padded8 >= 512:
            return _round_up((padded8 + 1) // 2, 8)
        return padded8
    return max(256, (requested // 256) * 256)


def prepare_params(params, obs_dim):
    """One-time preprocessing (hoisted out of the per-call forward).

    Splits W1 so the obs/act concat can be fused into two matmuls inside the
    kernel, avoiding a per-call HBM concat of the activations.
    """
    w1, b1, w2, b2, w3, b3 = params
    return (w1[:obs_dim], w1[obs_dim:], b1, w2, b2, w3, b3)


@functools.partial(jax.jit, static_argnames=("batch_tile",))
def ensemble_q_forward(obs, act, prepared_params, batch_tile=1024):
    """EnsembleQNet.forward: cat([obs, act], dim=1) -> shared MLP -> [B, E]."""
    w1_obs, w1_act, b1, w2, b2, w3, b3 = prepared_params
    batch, obs_dim = obs.shape
    act_dim = act.shape[1]
    d_in = obs_dim + act_dim
    h1 = w1_obs.shape[1]
    h2 = w2.shape[1]
    e = w3.shape[1]

    # --- batch tiling / padding (static at trace time) -----------------------
    bt = _pick_batch_tile(batch, batch_tile)
    batch_padded = _round_up(batch, bt)
    if batch_padded != batch:
        obs_in = jnp.pad(obs, ((0, batch_padded - batch), (0, 0)))
        act_in = jnp.pad(act, ((0, batch_padded - batch), (0, 0)))
    else:
        obs_in, act_in = obs, act

    grid = (batch_padded // bt,)

    flops = 2 * batch_padded * (d_in * h1 + h1 * h2 + h2 * e)
    bytes_accessed = 4 * (batch_padded * (d_in + e)
                          + d_in * h1 + h1 + h1 * h2 + h2 + h2 * e + e)

    out = pl.pallas_call(
        _ensemble_q_kernel,
        out_shape=jax.ShapeDtypeStruct((batch_padded, e), jnp.float32),
        grid_spec=pltpu.PrefetchScalarGridSpec(
            num_scalar_prefetch=0,
            grid=grid,
            in_specs=[
                pl.BlockSpec((bt, obs_dim), lambda i: (i, 0)),   # obs tile
                pl.BlockSpec((bt, act_dim), lambda i: (i, 0)),   # act tile
                pl.BlockSpec((obs_dim, h1), lambda i: (0, 0)),   # W1[:obs_dim]
                pl.BlockSpec((act_dim, h1), lambda i: (0, 0)),   # W1[obs_dim:]
                pl.BlockSpec((1, h1), lambda i: (0, 0)),         # b1
                pl.BlockSpec((h1, h2), lambda i: (0, 0)),        # W2
                pl.BlockSpec((1, h2), lambda i: (0, 0)),         # b2
                pl.BlockSpec((h2, e), lambda i: (0, 0)),         # W3
                pl.BlockSpec((1, e), lambda i: (0, 0)),          # b3
            ],
            out_specs=pl.BlockSpec((bt, e), lambda i: (i, 0)),
        ),
        compiler_params=pltpu.CompilerParams(
            dimension_semantics=("parallel",)),
        cost_estimate=pl.CostEstimate(
            flops=flops, transcendentals=0, bytes_accessed=bytes_accessed),
    )(obs_in, act_in, w1_obs, w1_act, b1, w2, b2, w3, b3)

    # Drop batch padding only if any was added (no ensemble-lane padding now).
    if batch_padded != batch:
        out = out[:batch]
    return out


def init_ensemble_qnet_params(key, obs_dim, act_dim, shared_hidden,
                              ensemble_num):
    """Deterministic init matching PyTorch nn.Linear default (U[-1/sqrt(fan_in), 1/sqrt(fan_in)])."""
    sizes = [obs_dim + act_dim] + list(shared_hidden) + [ensemble_num]
    params = []
    for j in range(len(sizes) - 1):
        fan_in, fan_out = sizes[j], sizes[j + 1]
        key, kw, kb = jax.random.split(key, 3)
        bound = 1.0 / jnp.sqrt(fan_in)
        w = jax.random.uniform(kw, (fan_in, fan_out), jnp.float32,
                               minval=-bound, maxval=bound)
        b = jax.random.uniform(kb, (1, fan_out), jnp.float32,
                               minval=-bound, maxval=bound)
        params += [w, b]
    return tuple(params)


def _reference_forward(obs, act, params):
    w1, b1, w2, b2, w3, b3 = params
    x = jnp.concatenate([obs, act], axis=1)
    h1 = jnp.maximum(x @ w1 + b1, 0.0)
    h2 = jnp.maximum(h1 @ w2 + b2, 0.0)
    return h2 @ w3 + b3


if __name__ == "__main__":
    # Small shapes consistent with the module.
    batch = 8
    obs_dim = 12
    act_dim = 4
    shared_hidden = [32, 32]
    ensemble_num = 5

    key = jax.random.PRNGKey(0)
    k_obs, k_act, k_param = jax.random.split(key, 3)
    obs = jax.random.normal(k_obs, (batch, obs_dim), jnp.float32)
    act = jax.random.normal(k_act, (batch, act_dim), jnp.float32)
    params = init_ensemble_qnet_params(k_param, obs_dim, act_dim,
                                       shared_hidden, ensemble_num)
    prepared = prepare_params(params, obs_dim)   # one-time, outside the hot path

    # Case 1: small batch, single grid step, no padding.
    out = jax.block_until_ready(ensemble_q_forward(obs, act, prepared))
    ref = _reference_forward(obs, act, params)
    assert out.shape == (batch, ensemble_num)
    assert jnp.allclose(out, ref, atol=1e-5, rtol=1e-5), "mismatch vs reference"

    # Case 2: batch not a multiple of 8 (row-padding path, still one step).
    batch2 = 20
    obs2 = jax.random.normal(jax.random.PRNGKey(1), (batch2, obs_dim), jnp.float32)
    act2 = jax.random.normal(jax.random.PRNGKey(2), (batch2, act_dim), jnp.float32)
    out2 = jax.block_until_ready(ensemble_q_forward(obs2, act2, prepared))
    ref2 = _reference_forward(obs2, act2, params)
    assert out2.shape == (batch2, ensemble_num)
    assert jnp.allclose(out2, ref2, atol=1e-5, rtol=1e-5), "mismatch (padded batch)"

    # Case 3: larger batch exercising the 2-step split + padding path.
    batch3 = 520
    obs3 = jax.random.normal(jax.random.PRNGKey(3), (batch3, obs_dim), jnp.float32)
    act3 = jax.random.normal(jax.random.PRNGKey(4), (batch3, act_dim), jnp.float32)
    out3 = jax.block_until_ready(ensemble_q_forward(obs3, act3, prepared))
    ref3 = _reference_forward(obs3, act3, params)
    assert out3.shape == (batch3, ensemble_num)
    assert jnp.allclose(out3, ref3, atol=1e-5, rtol=1e-5), "mismatch (large batch)"

    print("KERNEL_OK")
</pallas_src>

<mosaic_0001>
module attributes {stable_mosaic.version = 11 : i64} {
  func.func @_ensemble_q_kernel(%arg0: i32, %arg1: memref<8x12xf32, #tpu.memory_space<vmem>>, %arg2: memref<8x4xf32, #tpu.memory_space<vmem>>, %arg3: memref<12x32xf32, #tpu.memory_space<vmem>>, %arg4: memref<4x32xf32, #tpu.memory_space<vmem>>, %arg5: memref<1x32xf32, #tpu.memory_space<vmem>>, %arg6: memref<32x32xf32, #tpu.memory_space<vmem>>, %arg7: memref<1x32xf32, #tpu.memory_space<vmem>>, %arg8: memref<32x5xf32, #tpu.memory_space<vmem>>, %arg9: memref<1x5xf32, #tpu.memory_space<vmem>>, %arg10: memref<8x5xf32, #tpu.memory_space<vmem>>) attributes {dimension_semantics = [#tpu.dimension_semantics<parallel>], iteration_bounds = array<i64: 1>, scalar_prefetch = 0 : i64, scratch_operands = 0 : i64, tpu.core_type = #tpu.core_type<tc>, window_params = [{transform_indices = @transform_0, window_bounds = array<i64: 8, 12>}, {transform_indices = @transform_1, window_bounds = array<i64: 8, 4>}, {pipeline_mode = #tpu.pipeline_mode<synchronous>, transform_indices = @transform_2, window_bounds = array<i64: 12, 32>}, {pipeline_mode = #tpu.pipeline_mode<synchronous>, transform_indices = @transform_3, window_bounds = array<i64: 4, 32>}, {pipeline_mode = #tpu.pipeline_mode<synchronous>, transform_indices = @transform_4, window_bounds = array<i64: 1, 32>}, {pipeline_mode = #tpu.pipeline_mode<synchronous>, transform_indices = @transform_5, window_bounds = array<i64: 32, 32>}, {pipeline_mode = #tpu.pipeline_mode<synchronous>, transform_indices = @transform_6, window_bounds = array<i64: 1, 32>}, {pipeline_mode = #tpu.pipeline_mode<synchronous>, transform_indices = @transform_7, window_bounds = array<i64: 32, 5>}, {pipeline_mode = #tpu.pipeline_mode<synchronous>, transform_indices = @transform_8, window_bounds = array<i64: 1, 5>}, {transform_indices = @transform_9, window_bounds = array<i64: 8, 5>}]} {
    %c0 = arith.constant 0 : index
    %c0_0 = arith.constant 0 : index
    %0 = vector.load %arg1[%c0, %c0_0] : memref<8x12xf32, #tpu.memory_space<vmem>>, vector<8x12xf32>
    %c0_1 = arith.constant 0 : index
    %c0_2 = arith.constant 0 : index
    %1 = vector.load %arg3[%c0_1, %c0_2] : memref<12x32xf32, #tpu.memory_space<vmem>>, vector<12x32xf32>
    %cst = arith.constant dense<0.000000e+00> : vector<8x32xf32>
    %2 = tpu.matmul %0, %1, %cst {dimension_numbers = #tpu.dot_dimension_numbers<[1], [0], [0], [1], [0, 0, 1, 1], [], []>} : vector<8x12xf32>, vector<12x32xf32>, vector<8x32xf32> -> vector<8x32xf32>
    %c0_3 = arith.constant 0 : index
    %c0_4 = arith.constant 0 : index
    %3 = vector.load %arg2[%c0_3, %c0_4] : memref<8x4xf32, #tpu.memory_space<vmem>>, vector<8x4xf32>
    %c0_5 = arith.constant 0 : index
    %c0_6 = arith.constant 0 : index
    %4 = vector.load %arg4[%c0_5, %c0_6] : memref<4x32xf32, #tpu.memory_space<vmem>>, vector<4x32xf32>
    %cst_7 = arith.constant dense<0.000000e+00> : vector<8x32xf32>
    %5 = tpu.matmul %3, %4, %cst_7 {dimension_numbers = #tpu.dot_dimension_numbers<[1], [0], [0], [1], [0, 0, 1, 1], [], []>} : vector<8x4xf32>, vector<4x32xf32>, vector<8x32xf32> -> vector<8x32xf32>
    %6 = arith.addf %2, %5 : vector<8x32xf32>
    %c0_8 = arith.constant 0 : index
    %c0_9 = arith.constant 0 : index
    %7 = vector.load %arg5[%c0_8, %c0_9] : memref<1x32xf32, #tpu.memory_space<vmem>>, vector<1x32xf32>
    %8 = vector.broadcast %7 : vector<1x32xf32> to vector<8x32xf32>
    %9 = arith.addf %6, %8 : vector<8x32xf32>
    %cst_10 = arith.constant 0.000000e+00 : f32
    %10 = vector.broadcast %cst_10 : f32 to vector<8x32xf32>
    %11 = arith.maximumf %9, %10 : vector<8x32xf32>
    %c0_11 = arith.constant 0 : index
    %c0_12 = arith.constant 0 : index
    %12 = vector.load %arg6[%c0_11, %c0_12] : memref<32x32xf32, #tpu.memory_space<vmem>>, vector<32x32xf32>
    %cst_13 = arith.constant dense<0.000000e+00> : vector<8x32xf32>
    %13 = tpu.matmul %11, %12, %cst_13 {dimension_numbers = #tpu.dot_dimension_numbers<[1], [0], [0], [1], [0, 0, 1, 1], [], []>} : vector<8x32xf32>, vector<32x32xf32>, vector<8x32xf32> -> vector<8x32xf32>
    %c0_14 = arith.constant 0 : index
    %c0_15 = arith.constant 0 : index
    %14 = vector.load %arg7[%c0_14, %c0_15] : memref<1x32xf32, #tpu.memory_space<vmem>>, vector<1x32xf32>
    %15 = vector.broadcast %14 : vector<1x32xf32> to vector<8x32xf32>
    %16 = arith.addf %13, %15 : vector<8x32xf32>
    %cst_16 = arith.constant 0.000000e+00 : f32
    %17 = vector.broadcast %cst_16 : f32 to vector<8x32xf32>
    %18 = arith.maximumf %16, %17 : vector<8x32xf32>
    %c0_17 = arith.constant 0 : index
    %c0_18 = arith.constant 0 : index
    %19 = vector.load %arg8[%c0_17, %c0_18] : memref<32x5xf32, #tpu.memory_space<vmem>>, vector<32x5xf32>
    %cst_19 = arith.constant dense<0.000000e+00> : vector<8x5xf32>
    %20 = tpu.matmul %18, %19, %cst_19 {dimension_numbers = #tpu.dot_dimension_numbers<[1], [0], [0], [1], [0, 0, 1, 1], [], []>} : vector<8x32xf32>, vector<32x5xf32>, vector<8x5xf32> -> vector<8x5xf32>
    %c0_20 = arith.constant 0 : index
    %c0_21 = arith.constant 0 : index
    %21 = vector.load %arg9[%c0_20, %c0_21] : memref<1x5xf32, #tpu.memory_space<vmem>>, vector<1x5xf32>
    %22 = vector.broadcast %21 : vector<1x5xf32> to vector<8x5xf32>
    %23 = arith.addf %20, %22 : vector<8x5xf32>
    %c0_22 = arith.constant 0 : index
    %c0_23 = arith.constant 0 : index
    %24 = vector.load %arg10[%c0_22, %c0_23] : memref<8x5xf32, #tpu.memory_space<vmem>>, vector<8x5xf32>
    tpu.vector_store %arg10[%c0_22, %c0_23], %23 {strides = array<i32>} : memref<8x5xf32, #tpu.memory_space<vmem>>, vector<8x5xf32>,
    return
  }
  func.func @transform_0(%arg0: i32) -> (i32, i32) {
    %c0_i32 = arith.constant 0 : i32
    %c0_i32_0 = arith.constant 0 : i32
    return %arg0, %c0_i32 : i32, i32
  }
  func.func @transform_1(%arg0: i32) -> (i32, i32) {
    %c0_i32 = arith.constant 0 : i32
    %c0_i32_0 = arith.constant 0 : i32
    return %arg0, %c0_i32 : i32, i32
  }
  func.func @transform_2(%arg0: i32) -> (i32, i32) {
    %c0_i32 = arith.constant 0 : i32
    %c0_i32_0 = arith.constant 0 : i32
    %c0_i32_1 = arith.constant 0 : i32
    return %c0_i32, %c0_i32_0 : i32, i32
  }
  func.func @transform_3(%arg0: i32) -> (i32, i32) {
    %c0_i32 = arith.constant 0 : i32
    %c0_i32_0 = arith.constant 0 : i32
    %c0_i32_1 = arith.constant 0 : i32
    return %c0_i32, %c0_i32_0 : i32, i32
  }
  func.func @transform_4(%arg0: i32) -> (i32, i32) {
    %c0_i32 = arith.constant 0 : i32
    %c0_i32_0 = arith.constant 0 : i32
    %c0_i32_1 = arith.constant 0 : i32
    return %c0_i32, %c0_i32_0 : i32, i32
  }
  func.func @transform_5(%arg0: i32) -> (i32, i32) {
    %c0_i32 = arith.constant 0 : i32
    %c0_i32_0 = arith.constant 0 : i32
    %c0_i32_1 = arith.constant 0 : i32
    return %c0_i32, %c0_i32_0 : i32, i32
  }
  func.func @transform_6(%arg0: i32) -> (i32, i32) {
    %c0_i32 = arith.constant 0 : i32
    %c0_i32_0 = arith.constant 0 : i32
    %c0_i32_1 = arith.constant 0 : i32
    return %c0_i32, %c0_i32_0 : i32, i32
  }
  func.func @transform_7(%arg0: i32) -> (i32, i32) {
    %c0_i32 = arith.constant 0 : i32
    %c0_i32_0 = arith.constant 0 : i32
    %c0_i32_1 = arith.constant 0 : i32
    return %c0_i32, %c0_i32_0 : i32, i32
  }
  func.func @transform_8(%arg0: i32) -> (i32, i32) {
    %c0_i32 = arith.constant 0 : i32
    %c0_i32_0 = arith.constant 0 : i32
    %c0_i32_1 = arith.constant 0 : i32
    return %c0_i32, %c0_i32_0 : i32, i32
  }
  func.func @transform_9(%arg0: i32) -> (i32, i32) {
    %c0_i32 = arith.constant 0 : i32
    %c0_i32_0 = arith.constant 0 : i32
    return %arg0, %c0_i32 : i32, i32
  }
}

</mosaic_0001>

<llo_original>
// kernel: ensemble_q_forward.1
$region0: #{ensemble_q_forward.1}
  #allocation0 [shape = 'u32[]', space=smem, size = 0x4, offset = 0x4, fixed_abs, tag = 'smem constant byte address 0x4 - core index']
  #allocation1 [shape = 'u32[72,128]{1,0:T(1,128)}', space=vmem, size = 0x9000, scoped, tag = 'internal scratch']
  %s0 = inlined_call_operand.hbm [shape: f32[8,12], index: 0, kind: input, shape index: {}]
  %s1 = inlined_call_operand.vmem [shape: f32[8,4], index: 1, kind: input, shape index: {}]
  %s2 = inlined_call_operand.vmem [shape: f32[12,32], index: 2, kind: input, shape index: {}]
  %s3 = inlined_call_operand.hbm [shape: f32[4,32], index: 3, kind: input, shape index: {}]
  %s4 = inlined_call_operand.vmem [shape: f32[1,32], index: 4, kind: input, shape index: {}]
  %s5 = inlined_call_operand.vmem [shape: f32[32,32], index: 5, kind: input, shape index: {}]
  %s6 = inlined_call_operand.hbm [shape: f32[1,32], index: 6, kind: input, shape index: {}]
  %s7 = inlined_call_operand.vmem [shape: f32[32,5], index: 7, kind: input, shape index: {}]
  %s8 = inlined_call_operand.vmem [shape: f32[1,5], index: 8, kind: input, shape index: {}]
  %s9 = inlined_call_operand.hbm [shape: f32[8,5], index: 9, kind: output, shape index: {}]
  %s10 = sld [smem:[#allocation0]]
  $region58: #{ensemble_q_forward.1} parent=0
    _
  %s12 = ssub.s32 1, %s10
  %s13 = scalar_select 0, %s12, %s10
  $region1: #{ensemble_q_forward.1} parent=0
    #allocation2 [shape = 'u8[4096]{0}', space=vmem, size = 0x1000, scoped, tag = 'input window, operand 0, single buffered']
    #allocation3 [shape = 's32[1]{0}', space=sflag, size = 0x4, scoped, tag = 'scoped memory for ensemble_q_forward.1']
    #allocation4 [shape = 's32[1]{0}', space=sflag, size = 0x4, scoped, tag = 'scoped memory for ensemble_q_forward.1']
    #allocation5 [shape = 'u8[2048]{0}', space=vmem, size = 0x800, scoped, tag = 'input window, operand 3, single buffered']
    #allocation6 [shape = 's32[1]{0}', space=sflag, size = 0x4, scoped, tag = 'scoped memory for ensemble_q_forward.1']
    #allocation7 [shape = 'u8[512]{0}', space=vmem, size = 0x400, scoped, tag = 'input window, operand 6, single buffered']
    #allocation8 [shape = 'u8[4096]{0}', space=vmem, size = 0x1000, scoped, tag = 'output window, operand 0, single buffered']
    %14 = vsyncpa [#allocation3], 0
    %15 = vsyncpa [#allocation6], 0
    %16 = vsyncpa [#allocation4], 0
    // Predicated region
    $region2: #{ensemble_q_forward.1} parent=1 // pred_check
      _
    $region3: #{ensemble_q_forward.1} parent=1 // pred_check_branch
      %18 = sbr.rel (0) target = $region5
    $region4: #{ensemble_q_forward.1} parent=1 // pred_region
      %20 = vsyncadd [#allocation3], 0
      %s22 = sshll.u32 %s0, 4
      %s23 = int_to_ptr.hbm [resolvable:$true] %s22
      %s24 = sshll.u32 [#allocation2], 4
      %s25 = int_to_ptr.vmem [resolvable:$true] %s24
      %27 = dma.hbm_to_vmem [thread:$0]  %s23, 128, %s25, [#allocation3]
    $region5: #{ensemble_q_forward.1} parent=1 // pred_fallthru
      _
    // Predicated region
    $region6: #{ensemble_q_forward.1} parent=1 // pred_check
      _
    $region7: #{ensemble_q_forward.1} parent=1 // pred_check_branch
      %29 = sbr.rel (0) target = $region9
    $region8: #{ensemble_q_forward.1} parent=1 // pred_region
      _
    $region9: #{ensemble_q_forward.1} parent=1 // pred_fallthru
      _
    // Predicated region
    $region10: #{ensemble_q_forward.1} parent=1 // pred_check
      _
    $region11: #{ensemble_q_forward.1} parent=1 // pred_check_branch
      %31 = sbr.rel (0) target = $region13
    $region12: #{ensemble_q_forward.1} parent=1 // pred_region
      _
    $region13: #{ensemble_q_forward.1} parent=1 // pred_fallthru
      _
    // Predicated region
    $region14: #{ensemble_q_forward.1} parent=1 // pred_check
      _
    $region15: #{ensemble_q_forward.1} parent=1 // pred_check_branch
      %33 = sbr.rel (0) target = $region17
    $region16: #{ensemble_q_forward.1} parent=1 // pred_region
      %35 = vsyncadd [#allocation6], 0
      %s37 = sshll.u32 %s3, 4
      %s38 = int_to_ptr.hbm [resolvable:$true] %s37
      %s39 = sshll.u32 [#allocation5], 4
      %s40 = int_to_ptr.vmem [resolvable:$true] %s39
      %42 = dma.hbm_to_vmem [thread:$0]  %s38, 64, %s40, [#allocation6]
    $region17: #{ensemble_q_forward.1} parent=1 // pred_fallthru
      _
    // Predicated region
    $region18: #{ensemble_q_forward.1} parent=1 // pred_check
      _
    $region19: #{ensemble_q_forward.1} parent=1 // pred_check_branch
      %44 = sbr.rel (0) target = $region21
    $region20: #{ensemble_q_forward.1} parent=1 // pred_region
      _
    $region21: #{ensemble_q_forward.1} parent=1 // pred_fallthru
      _
    // Predicated region
    $region22: #{ensemble_q_forward.1} parent=1 // pred_check
      _
    $region23: #{ensemble_q_forward.1} parent=1 // pred_check_branch
      %46 = sbr.rel (0) target = $region25
    $region24: #{ensemble_q_forward.1} parent=1 // pred_region
      _
    $region25: #{ensemble_q_forward.1} parent=1 // pred_fallthru
      _
    // Predicated region
    $region26: #{ensemble_q_forward.1} parent=1 // pred_check
      _
    $region27: #{ensemble_q_forward.1} parent=1 // pred_check_branch
      %48 = sbr.rel (0) target = $region29
    $region28: #{ensemble_q_forward.1} parent=1 // pred_region
      %50 = vsyncadd [#allocation6], 0
      %s52 = sshll.u32 %s6, 4
      %s53 = int_to_ptr.hbm [resolvable:$true] %s52
      %s54 = sshll.u32 [#allocation7], 4
      %s55 = int_to_ptr.vmem [resolvable:$true] %s54
      %57 = dma.hbm_to_vmem [thread:$0]  %s53, 16, %s55, [#allocation6]
    $region29: #{ensemble_q_forward.1} parent=1 // pred_fallthru
      _
    // Predicated region
    $region30: #{ensemble_q_forward.1} parent=1 // pred_check
      _
    $region31: #{ensemble_q_forward.1} parent=1 // pred_check_branch
      %59 = sbr.rel (0) target = $region33
    $region32: #{ensemble_q_forward.1} parent=1 // pred_region
      _
    $region33: #{ensemble_q_forward.1} parent=1 // pred_fallthru
      _
    // Predicated region
    $region34: #{ensemble_q_forward.1} parent=1 // pred_check
      _
    $region35: #{ensemble_q_forward.1} parent=1 // pred_check_branch
      %61 = sbr.rel (0) target = $region37
    $region36: #{ensemble_q_forward.1} parent=1 // pred_region
      _
    $region37: #{ensemble_q_forward.1} parent=1 // pred_fallthru
      _
    // Predicated region
    $region38: #{ensemble_q_forward.1} parent=1 // pred_check
      _
    $region39: #{ensemble_q_forward.1} parent=1 // pred_check_branch
      %63 = sbr.rel (0) target = $region41
    $region40: #{ensemble_q_forward.1} parent=1 // pred_region
      %65 = dma.done [#allocation3], 128
    $region41: #{ensemble_q_forward.1} parent=1 // pred_fallthru
      _
    // Predicated region
    $region42: #{ensemble_q_forward.1} parent=1 // pred_check
      _
    $region43: #{ensemble_q_forward.1} parent=1 // pred_check_branch
      %67 = sbr.rel (0) target = $region45
    $region44: #{ensemble_q_forward.1} parent=1 // pred_region
      %69 = dma.done [#allocation6], 64
    $region45: #{ensemble_q_forward.1} parent=1 // pred_fallthru
      _
    // Predicated region
    $region46: #{ensemble_q_forward.1} parent=1 // pred_check
      _
    $region47: #{ensemble_q_forward.1} parent=1 // pred_check_branch
      %71 = sbr.rel (0) target = $region49
    $region48: #{ensemble_q_forward.1} parent=1 // pred_region
      %73 = dma.done [#allocation6], 16
    $region49: #{ensemble_q_forward.1} parent=1 // pred_fallthru
      _
    %v74 = vld [vmem:[#allocation2] sm:$0xff]
    %v75 = vld [vmem:[%s2] sm:$0xff]
    %v76 = vld [vmem:[%s2 + $0x8] sm:$0xf]
    %v77 = vld [vmem:[%s1] sm:$0xff]
    %v78 = vld [vmem:[#allocation5] sm:$0xf]
    %vm79 = vcmask 31744
    %v81 = vsel %vm79, %v77, 0
    %vm83 = vcmask 1043456
    %v85 = vsel %vm83, %v78, 0
    %87 = vmatpush.msra.mxu0 0.0
    %88 = vmatpush.msra.mxu0 0.0
    %89 = vmatpush.msra.mxu0 0.0
    %90 = vmatpush.msra.mxu0 0.0
    %91 = vmatpush.msra.mxu0 0.0
    %92 = vmatpush.msra.mxu0 0.0
    %93 = vmatpush.msra.mxu0 0.0
    %94 = vmatpush.msra.mxu0 0.0
    %95 = vmatpush.msra.mxu0 0.0
    %96 = vmatpush.msra.mxu0 0.0
    %97 = vmatpush.msra.mxu0 0.0
    %98 = vmatpush.msra.mxu0 0.0
    %99 = vmatpush.msra.mxu0 0.0
    %100 = vmatpush.msra.mxu0 0.0
    %101 = vmatpush.msra.mxu0 0.0
    %102 = vmatpush.msra.mxu0 %v85
    %103 = vmatmul.f32.gmra.mxu0 %v81
    %v104 = vpop.f32.mrf.mxu0
    %v105 = vadd.f32 0.0, %v104
    %106 = vdwg.mxu0
    %vm107 = vcmask 97280
    %v109 = vsel %vm107, %v74, 0
    %v112 = vsel %vm83, %v76, 0
    %114 = vmatpush.msra.mxu0 0.0
    %115 = vmatpush.msra.mxu0 0.0
    %116 = vmatpush.msra.mxu0 0.0
    %117 = vmatpush.msra.mxu0 0.0
    %118 = vmatpush.msra.mxu0 0.0
    %119 = vmatpush.msra.mxu0 0.0
    %120 = vmatpush.msra.mxu0 0.0
    %121 = vmatpush.msra.mxu0 0.0
    %122 = vmatpush.msra.mxu0 0.0
    %123 = vmatpush.msra.mxu0 0.0
    %124 = vmatpush.msra.mxu0 0.0
    %125 = vmatpush.msra.mxu0 0.0
    %126 = vmatpush.msra.mxu0 0.0
    %127 = vmatpush.msra.mxu0 0.0
    %128 = vmatpush.msra.mxu0 %v112
    %129 = vmatpush.msra.mxu0 %v75
    %130 = vmatmul.f32.gmra.mxu0 %v109
    %v131 = vpop.f32.mrf.mxu0
    %v132 = vadd.f32 %v105, %v131
    %133 = vdwg.mxu0
    %v134 = vld [vmem:[%s4] sm:$0x1]
    %v136 = vperm.slane %v134, 0
    %v138 = vadd.f32 %v132, %v136
    %v139 = vmax.f32 %v138, 0.0
    %v140 = vld [vmem:[%s5] sm:$0xff]
    %v141 = vld [vmem:[%s5 + $0x8] sm:$0xff]
    %v142 = vld [vmem:[%s5 + $0x10] sm:$0xff]
    %v143 = vld [vmem:[%s5 + $0x18] sm:$0xff]
    %v144 = vld [vmem:[#allocation7] sm:$0x1]
    %v146 = vperm.slane %v144, 0
    %vm148 = vcmask 261120
    %v150 = vsel %vm148, %v139, 0
    %152 = vmatpush.msra.mxu0 0.0
    %153 = vmatpush.msra.mxu0 0.0
    %154 = vmatpush.msra.mxu0 0.0
    %155 = vmatpush.msra.mxu0 0.0
    %156 = vmatpush.msra.mxu0 0.0
    %157 = vmatpush.msra.mxu0 0.0
    %158 = vmatpush.msra.mxu0 0.0
    %159 = vmatpush.msra.mxu0 0.0
    %160 = vmatpush.msra.mxu0 0.0
    %161 = vmatpush.msra.mxu0 0.0
    %162 = vmatpush.msra.mxu0 0.0
    %163 = vmatpush.msra.mxu0 0.0
    %164 = vmatpush.msra.mxu0 %v143
    %165 = vmatpush.msra.mxu0 %v142
    %166 = vmatpush.msra.mxu0 %v141
    %167 = vmatpush.msra.mxu0 %v140
    %168 = vmatmul.f32.gmra.mxu0 %v150
    %v169 = vpop.f32.mrf.mxu0
    %v170 = vadd.f32 %v146, %v169
    %171 = vdwg.mxu0
    %v172 = vmax.f32 %v170, 0.0
    %v173 = vld [vmem:[%s7] sm:$0xff]
    %v174 = vld [vmem:[%s7 + $0x8] sm:$0xff]
    %v175 = vld [vmem:[%s7 + $0x10] sm:$0xff]
    %v176 = vld [vmem:[%s7 + $0x18] sm:$0xff]
    %v177 = vld [vmem:[%s8] sm:$0x1]
    %v179 = vperm.slane %v177, 0
    %v182 = vsel %vm148, %v172, 0
    %184 = vmatpush.msra.mxu0 0.0
    %185 = vmatpush.msra.mxu0 0.0
    %186 = vmatpush.msra.mxu0 0.0
    %187 = vmatpush.msra.mxu0 0.0
    %188 = vmatpush.msra.mxu0 0.0
    %189 = vmatpush.msra.mxu0 0.0
    %190 = vmatpush.msra.mxu0 0.0
    %191 = vmatpush.msra.mxu0 0.0
    %192 = vmatpush.msra.mxu0 0.0
    %193 = vmatpush.msra.mxu0 0.0
    %194 = vmatpush.msra.mxu0 0.0
    %195 = vmatpush.msra.mxu0 0.0
    %196 = vmatpush.msra.mxu0 %v176
    %197 = vmatpush.msra.mxu0 %v175
    %198 = vmatpush.msra.mxu0 %v174
    %199 = vmatpush.msra.mxu0 %v173
    %200 = vmatmul.f32.gmra.mxu0 %v182
    %v201 = vpop.f32.mrf.mxu0
    %v202 = vadd.f32 %v179, %v201
    %203 = vdwg.mxu0
    %vm204 = vcmask 39936
    %205 = vst.msk [vmem:[#allocation8] sm:$0xff] %vm204, %v202
    // Predicated region
    $region50: #{ensemble_q_forward.1} parent=1 // pred_check
      _
    $region51: #{ensemble_q_forward.1} parent=1 // pred_check_branch
      %207 = sbr.rel (0) target = $region53
    $region52: #{ensemble_q_forward.1} parent=1 // pred_region
      %209 = vsyncadd [#allocation4], 0
      %s211 = sshll.u32 [#allocation8], 4
      %s212 = int_to_ptr.vmem [resolvable:$true] %s211
      %s213 = sshll.u32 %s9, 4
      %s214 = int_to_ptr.hbm [resolvable:$true] %s213
      %216 = dma.vmem_to_hbm [thread:$0]  %s212, 128, %s214, [#allocation4]
    $region53: #{ensemble_q_forward.1} parent=1 // pred_fallthru
      _
    // Predicated region
    $region54: #{ensemble_q_forward.1} parent=1 // pred_check
      _
    $region55: #{ensemble_q_forward.1} parent=1 // pred_check_branch
      %218 = sbr.rel (0) target = $region57
    $region56: #{ensemble_q_forward.1} parent=1 // pred_region
      %220 = dma.done [#allocation4], 128
    $region57: #{ensemble_q_forward.1} parent=1 // pred_fallthru
      _
    %221 = vsyncpa [#allocation3], 1
    %222 = vsyncpa [#allocation6], 1
    %223 = vsyncpa [#allocation4], 1

</llo_original>
